<compile_context>
chip_gen: v5e
topology: v5e:2x2
jax: 0.10.0
libtpu: 0.0.40
codegen_flags: <defaults>
</compile_context>

<pallas_src>
import functools

import jax
import jax.numpy as jnp
from jax.experimental import pallas as pl
from jax.experimental.pallas import tpu as pltpu


# ----------------------------- Pallas kernel -------------------------------- #

def cnn1d_kernel(x_ref, wx_ref, be_ref, w1_ref, b1_ref, w2_ref, b2_ref, out_ref):
    # x_ref : (TB, L)   input rows (batch on sublanes, positions on lanes)
    # wx_ref: (L, 2F)   conv folded to a dense matrix (even | odd positions)
    # be_ref: (1, 2F)   conv bias repeated per position (f32)
    # w1_ref: (F, HP)   fc1 weight, transposed + lane-padded (64 -> HP=128)
    # b1_ref: (1, HP)   (f32)
    # w2_ref: (HP, NP)  fc2 weight, transposed + lane-padded (classes -> NP=128)
    # b2_ref: (1, NP)   (f32)
    # out_ref:(TB, NP)  lane-dense padded logits (unmasked 128-lane store)
    x = x_ref[...].astype(wx_ref.dtype)

    # Conv1d(1->16, k=3, pad=1), evaluated at even and odd output positions in
    # a single MXU matmul (padding handled inside Wx), f32 accumulation.
    eo = jnp.dot(x, wx_ref[...], preferred_element_type=jnp.float32) + be_ref[...]
    f = eo.shape[1] // 2

    # ReLU + MaxPool1d(2):  maxpool(relu(conv)) == relu(max(even, odd)).
    # 128-aligned lane slices -> no relayout; `flat` is the flattened feature
    # slab in PyTorch .view order (c*(L//2) + j), feeding the MXU directly.
    flat = jnp.maximum(jnp.maximum(eo[:, :f], eo[:, f:]), 0.0)        # (TB, F)

    # fc1 + ReLU (bf16 operands by default, f32 accumulation on the MXU).
    h = jnp.dot(flat.astype(w1_ref.dtype), w1_ref[...],
                preferred_element_type=jnp.float32) + b1_ref[...]
    h = jnp.maximum(h, 0.0)                                           # (TB, HP)

    # fc2 (lane-padded N so the store is full-lane; padding contributes zeros).
    out = jnp.dot(h.astype(w2_ref.dtype), w2_ref[...],
                  preferred_element_type=jnp.float32) + b2_ref[...]
    out_ref[...] = out.astype(out_ref.dtype)


# ------------------------------ Packing (once per param set) ----------------- #

def _round_up(n, m):
    return ((n + m - 1) // m) * m


def _fold_conv_weights(wc, bc, L):
    """Fold Conv1d(1,16,k=3,pad=1) + even/odd split into a dense (L, 2F) matrix.

    Column layout: col = e*F + c*H + j holds the conv output of channel c at
    spatial position 2j + e (e=0 even, e=1 odd), i.e. the two MaxPool1d(2)
    partners of flattened feature c*H + j (PyTorch flatten order).
    """
    cout, _, kw = wc.shape                      # (16, 1, 3)
    wc2 = wc[:, 0, :]                           # (16, 3)
    H = L // 2                                  # MaxPool1d(2) truncates odd tail
    F = cout * H
    p = jnp.arange(L)
    j = jnp.arange(H)
    e = jnp.arange(2)
    # conv[c, 2j+e] = sum_k wc2[c, k] * x[(2j+e) + k - 1], zero outside [0, L)
    k = p[:, None, None] - (2 * j[None, None, :] + e[None, :, None]) + 1   # (L,2,H)
    valid = ((k >= 0) & (k < kw)).astype(wc2.dtype)
    kc = jnp.clip(k, 0, kw - 1)
    wx = wc2[:, kc] * valid[None]                               # (16, L, 2, H)
    wx = jnp.transpose(wx, (1, 2, 0, 3)).reshape(L, 2 * F)      # (L, 2F)
    be = jnp.tile(jnp.repeat(bc, H), 2)[None, :]                # (1, 2F)
    return wx, be, F


def pack_params(params, input_size, *, compute_dtype=jnp.bfloat16):
    """Fold + transpose + lane-pad weights ONCE; returns (packed_arrays, out_dtype)."""
    wc, bc, w1, b1, w2, b2 = params
    L = input_size
    hidden = w1.shape[0]                        # 64
    num_classes = w2.shape[0]
    out_dtype = jnp.float32 if compute_dtype == jnp.float32 else jnp.bfloat16

    wx, be, F = _fold_conv_weights(wc, bc, L)
    HP = _round_up(hidden, 128)                 # 128
    NP = _round_up(num_classes, 128)            # 128

    # v7x VMEM guard: wx is (L, 16*L), i.e. O(L^2); with double-buffering it
    # would blow v7x's 64 MiB VMEM before v5e/v6e's 128 MiB for large L.
    wx_bytes = L * 2 * F * jnp.dtype(compute_dtype).itemsize
    assert 2 * wx_bytes < 32 * 1024 * 1024, (
        "folded conv matrix too large for VMEM; tile its 2F column axis")
    # TODO(synk): for large input_size, add a second grid axis tiling wx's 2F
    # columns (or use 3 shifted-add conv taps) instead of the dense fold.

    wxp = wx.astype(compute_dtype)
    bep = be.astype(jnp.float32)
    w1t = jnp.zeros((F, HP), compute_dtype).at[:, :hidden].set(
        w1.T.astype(compute_dtype))
    b1p = jnp.zeros((1, HP), jnp.float32).at[0, :hidden].set(b1)
    w2t = jnp.zeros((HP, NP), compute_dtype).at[:hidden, :num_classes].set(
        w2.T.astype(compute_dtype))
    b2p = jnp.zeros((1, NP), jnp.float32).at[0, :num_classes].set(b2)
    return (wxp, bep, w1t, b1p, w2t, b2p), out_dtype


# ------------------------------ Forward wrapper ------------------------------ #

def _choose_tiling(b, preferred=512):
    """Pick (batch tile, padded batch).  Keeps >= 2 grid steps when the batch is
    large enough (feeds v7x's 2 TensorCores); the extra step is negligible on
    v5e/v6e.  Never falls back to tiny tiles: the batch is padded instead."""
    if b <= 128:
        tb = _round_up(max(b, 8), 8)            # single full-extent block
        return tb, tb
    tb = 128
    while tb * 2 <= preferred and _round_up(b, tb * 2) // (tb * 2) >= 2:
        tb *= 2
    return tb, _round_up(b, tb)


def cnn1d_forward(x, packed, *, num_classes, out_dtype=jnp.bfloat16,
                  batch_block=512):
    """x: (B, 1, L) float32, like the PyTorch NCL input with one channel."""
    wx, be, w1t, b1p, w2t, b2p = packed
    B, cin, L = x.shape
    assert cin == 1 and wx.shape[0] == L
    F = wx.shape[1] // 2
    HP = w1t.shape[1]
    NP = w2t.shape[1]

    tb, b_pad = _choose_tiling(B, batch_block)
    x2 = x[:, 0, :]                             # (B, L)
    if b_pad != B:
        x2 = jnp.pad(x2, ((0, b_pad - B), (0, 0)))   # pad rows -> garbage logits,
                                                     # sliced off below

    out_pad = pl.pallas_call(
        cnn1d_kernel,
        out_shape=jax.ShapeDtypeStruct((b_pad, NP), out_dtype),
        grid=(b_pad // tb,),
        in_specs=[
            pl.BlockSpec((tb, L), lambda i: (i, 0)),        # batch tile per step
            pl.BlockSpec((L, 2 * F), lambda i: (0, 0)),     # weights: replicated
            pl.BlockSpec((1, 2 * F), lambda i: (0, 0)),
            pl.BlockSpec((F, HP), lambda i: (0, 0)),
            pl.BlockSpec((1, HP), lambda i: (0, 0)),
            pl.BlockSpec((HP, NP), lambda i: (0, 0)),
            pl.BlockSpec((1, NP), lambda i: (0, 0)),
        ],
        out_specs=pl.BlockSpec((tb, NP), lambda i: (i, 0)),
        compiler_params=pltpu.CompilerParams(
            dimension_semantics=("parallel",),              # v7x: 2 TCs share batch
        ),
    )(x2, wx, be, w1t, b1p, w2t, b2p)

    # Drop batch padding + lane padding outside the kernel; f32 logits out.
    return out_pad[:B, :num_classes].astype(jnp.float32)


# ------------------------------ Reference ------------------------------------ #

def cnn1d_reference(x, params):
    """Pure-JAX f32 reference mirroring the PyTorch module semantics (even L)."""
    wc, bc, w1, b1, w2, b2 = params
    B, _, L = x.shape
    conv = jax.lax.conv_general_dilated(
        x, wc, window_strides=(1,), padding=((1, 1),),
        dimension_numbers=("NCH", "OIH", "NCH"),
    ) + bc[None, :, None]
    conv = jnp.maximum(conv, 0.0)
    pooled = jnp.max(conv.reshape(B, 16, L // 2, 2), axis=-1)
    flat = pooled.reshape(B, 16 * (L // 2))
    h = jnp.maximum(flat @ w1.T + b1, 0.0)
    return h @ w2.T + b2


def init_params(key, input_size, num_classes):
    k1, k2, k3, k4, k5, k6 = jax.random.split(key, 6)
    wc = jax.random.normal(k1, (16, 1, 3), jnp.float32) * 0.2            # conv1.weight
    bc = jax.random.normal(k2, (16,), jnp.float32) * 0.1                 # conv1.bias
    f = 16 * (input_size // 2)
    w1 = jax.random.normal(k3, (64, f), jnp.float32) * (1.0 / f) ** 0.5  # fc1.weight
    b1 = jax.random.normal(k4, (64,), jnp.float32) * 0.1                 # fc1.bias
    w2 = jax.random.normal(k5, (num_classes, 64), jnp.float32) * 0.125   # fc2.weight
    b2 = jax.random.normal(k6, (num_classes,), jnp.float32) * 0.1        # fc2.bias
    return (wc, bc, w1, b1, w2, b2)


if __name__ == "__main__":
    input_size = 16
    num_classes = 5          # len(datasets) in the source script

    key = jax.random.PRNGKey(0)
    kx, kp = jax.random.split(key)
    params = init_params(kp, input_size, num_classes)

    # Pack / fold weights ONCE per parameter set (hoisted out of the call path).
    packed_f32, out_dt_f32 = pack_params(params, input_size,
                                         compute_dtype=jnp.float32)
    packed_bf16, out_dt_bf16 = pack_params(params, input_size)   # bf16 perf path

    fwd_f32 = jax.jit(functools.partial(
        cnn1d_forward, num_classes=num_classes, out_dtype=out_dt_f32))
    fwd_bf16 = jax.jit(functools.partial(
        cnn1d_forward, num_classes=num_classes, out_dtype=out_dt_bf16))

    # batch=200 exercises the pad-to-tile path (TB=128, grid=2 -- no TB=8
    # collapse); batch=20 exercises the single full-extent block path.
    for batch in (200, 20):
        x = jax.random.normal(kx, (batch, 1, input_size), jnp.float32)
        ref = cnn1d_reference(x, params)

        # Exact-precision path (f32 matmuls, f32 output).
        out_f32 = jax.block_until_ready(fwd_f32(x, packed_f32))
        assert out_f32.shape == (batch, num_classes)
        assert jnp.allclose(out_f32, ref, atol=1e-3, rtol=1e-3), "f32 kernel mismatch"

        # Default perf path (bf16 operands on all 3 matmuls, f32 MXU accum,
        # bf16 lane-dense padded output store).
        out = jax.block_until_ready(fwd_bf16(x, packed_bf16))
        assert out.shape == (batch, num_classes)
        assert jnp.allclose(out, ref, atol=5e-2, rtol=5e-2), "bf16 kernel mismatch"

    print("KERNEL_OK")
</pallas_src>

<mosaic_0001>
module attributes {stable_mosaic.version = 11 : i64} {
  func.func @cnn1d_kernel(%arg0: i32, %arg1: memref<128x16xf32, #tpu.memory_space<vmem>>, %arg2: memref<16x256xf32, #tpu.memory_space<vmem>>, %arg3: memref<1x256xf32, #tpu.memory_space<vmem>>, %arg4: memref<128x128xf32, #tpu.memory_space<vmem>>, %arg5: memref<1x128xf32, #tpu.memory_space<vmem>>, %arg6: memref<128x128xf32, #tpu.memory_space<vmem>>, %arg7: memref<1x128xf32, #tpu.memory_space<vmem>>, %arg8: memref<128x128xf32, #tpu.memory_space<vmem>>) attributes {dimension_semantics = [#tpu.dimension_semantics<parallel>], iteration_bounds = array<i64: 2>, scalar_prefetch = 0 : i64, scratch_operands = 0 : i64, tpu.core_type = #tpu.core_type<tc>, window_params = [{transform_indices = @transform_0, window_bounds = array<i64: 128, 16>}, {pipeline_mode = #tpu.pipeline_mode<synchronous>, transform_indices = @transform_1, window_bounds = array<i64: 16, 256>}, {pipeline_mode = #tpu.pipeline_mode<synchronous>, transform_indices = @transform_2, window_bounds = array<i64: 1, 256>}, {pipeline_mode = #tpu.pipeline_mode<synchronous>, transform_indices = @transform_3, window_bounds = array<i64: 128, 128>}, {pipeline_mode = #tpu.pipeline_mode<synchronous>, transform_indices = @transform_4, window_bounds = array<i64: 1, 128>}, {pipeline_mode = #tpu.pipeline_mode<synchronous>, transform_indices = @transform_5, window_bounds = array<i64: 128, 128>}, {pipeline_mode = #tpu.pipeline_mode<synchronous>, transform_indices = @transform_6, window_bounds = array<i64: 1, 128>}, {transform_indices = @transform_7, window_bounds = array<i64: 128, 128>}]} {
    %c0 = arith.constant 0 : index
    %c0_0 = arith.constant 0 : index
    %0 = vector.load %arg1[%c0, %c0_0] : memref<128x16xf32, #tpu.memory_space<vmem>>, vector<128x16xf32>
    %c0_1 = arith.constant 0 : index
    %c0_2 = arith.constant 0 : index
    %1 = vector.load %arg2[%c0_1, %c0_2] : memref<16x256xf32, #tpu.memory_space<vmem>>, vector<16x256xf32>
    %cst = arith.constant dense<0.000000e+00> : vector<128x256xf32>
    %2 = tpu.matmul %0, %1, %cst {dimension_numbers = #tpu.dot_dimension_numbers<[1], [0], [0], [1], [0, 0, 1, 1], [], []>} : vector<128x16xf32>, vector<16x256xf32>, vector<128x256xf32> -> vector<128x256xf32>
    %c0_3 = arith.constant 0 : index
    %c0_4 = arith.constant 0 : index
    %3 = vector.load %arg3[%c0_3, %c0_4] : memref<1x256xf32, #tpu.memory_space<vmem>>, vector<1x256xf32>
    %4 = vector.broadcast %3 : vector<1x256xf32> to vector<128x256xf32>
    %5 = arith.addf %2, %4 : vector<128x256xf32>
    %6 = vector.extract_strided_slice %5 {offsets = [0, 0], sizes = [128, 128], strides = [1, 1]} : vector<128x256xf32> to vector<128x128xf32>
    %7 = vector.extract_strided_slice %5 {offsets = [0, 128], sizes = [128, 128], strides = [1, 1]} : vector<128x256xf32> to vector<128x128xf32>
    %8 = arith.maximumf %6, %7 : vector<128x128xf32>
    %cst_5 = arith.constant 0.000000e+00 : f32
    %9 = vector.broadcast %cst_5 : f32 to vector<128x128xf32>
    %10 = arith.maximumf %8, %9 : vector<128x128xf32>
    %c0_6 = arith.constant 0 : index
    %c0_7 = arith.constant 0 : index
    %11 = vector.load %arg4[%c0_6, %c0_7] : memref<128x128xf32, #tpu.memory_space<vmem>>, vector<128x128xf32>
    %cst_8 = arith.constant dense<0.000000e+00> : vector<128x128xf32>
    %12 = tpu.matmul %10, %11, %cst_8 {dimension_numbers = #tpu.dot_dimension_numbers<[1], [0], [0], [1], [0, 0, 1, 1], [], []>} : vector<128x128xf32>, vector<128x128xf32>, vector<128x128xf32> -> vector<128x128xf32>
    %c0_9 = arith.constant 0 : index
    %c0_10 = arith.constant 0 : index
    %13 = vector.load %arg5[%c0_9, %c0_10] : memref<1x128xf32, #tpu.memory_space<vmem>>, vector<1x128xf32>
    %14 = vector.broadcast %13 : vector<1x128xf32> to vector<128x128xf32>
    %15 = arith.addf %12, %14 : vector<128x128xf32>
    %cst_11 = arith.constant 0.000000e+00 : f32
    %16 = vector.broadcast %cst_11 : f32 to vector<128x128xf32>
    %17 = arith.maximumf %15, %16 : vector<128x128xf32>
    %c0_12 = arith.constant 0 : index
    %c0_13 = arith.constant 0 : index
    %18 = vector.load %arg6[%c0_12, %c0_13] : memref<128x128xf32, #tpu.memory_space<vmem>>, vector<128x128xf32>
    %cst_14 = arith.constant dense<0.000000e+00> : vector<128x128xf32>
    %19 = tpu.matmul %17, %18, %cst_14 {dimension_numbers = #tpu.dot_dimension_numbers<[1], [0], [0], [1], [0, 0, 1, 1], [], []>} : vector<128x128xf32>, vector<128x128xf32>, vector<128x128xf32> -> vector<128x128xf32>
    %c0_15 = arith.constant 0 : index
    %c0_16 = arith.constant 0 : index
    %20 = vector.load %arg7[%c0_15, %c0_16] : memref<1x128xf32, #tpu.memory_space<vmem>>, vector<1x128xf32>
    %21 = vector.broadcast %20 : vector<1x128xf32> to vector<128x128xf32>
    %22 = arith.addf %19, %21 : vector<128x128xf32>
    %c0_17 = arith.constant 0 : index
    %c0_18 = arith.constant 0 : index
    %23 = vector.load %arg8[%c0_17, %c0_18] : memref<128x128xf32, #tpu.memory_space<vmem>>, vector<128x128xf32>
    tpu.vector_store %arg8[%c0_17, %c0_18], %22 {strides = array<i32>} : memref<128x128xf32, #tpu.memory_space<vmem>>, vector<128x128xf32>,
    return
  }
  func.func @transform_0(%arg0: i32) -> (i32, i32) {
    %c0_i32 = arith.constant 0 : i32
    %c0_i32_0 = arith.constant 0 : i32
    return %arg0, %c0_i32 : i32, i32
  }
  func.func @transform_1(%arg0: i32) -> (i32, i32) {
    %c0_i32 = arith.constant 0 : i32
    %c0_i32_0 = arith.constant 0 : i32
    %c0_i32_1 = arith.constant 0 : i32
    return %c0_i32, %c0_i32_0 : i32, i32
  }
  func.func @transform_2(%arg0: i32) -> (i32, i32) {
    %c0_i32 = arith.constant 0 : i32
    %c0_i32_0 = arith.constant 0 : i32
    %c0_i32_1 = arith.constant 0 : i32
    return %c0_i32, %c0_i32_0 : i32, i32
  }
  func.func @transform_3(%arg0: i32) -> (i32, i32) {
    %c0_i32 = arith.constant 0 : i32
    %c0_i32_0 = arith.constant 0 : i32
    %c0_i32_1 = arith.constant 0 : i32
    return %c0_i32, %c0_i32_0 : i32, i32
  }
  func.func @transform_4(%arg0: i32) -> (i32, i32) {
    %c0_i32 = arith.constant 0 : i32
    %c0_i32_0 = arith.constant 0 : i32
    %c0_i32_1 = arith.constant 0 : i32
    return %c0_i32, %c0_i32_0 : i32, i32
  }
  func.func @transform_5(%arg0: i32) -> (i32, i32) {
    %c0_i32 = arith.constant 0 : i32
    %c0_i32_0 = arith.constant 0 : i32
    %c0_i32_1 = arith.constant 0 : i32
    return %c0_i32, %c0_i32_0 : i32, i32
  }
  func.func @transform_6(%arg0: i32) -> (i32, i32) {
    %c0_i32 = arith.constant 0 : i32
    %c0_i32_0 = arith.constant 0 : i32
    %c0_i32_1 = arith.constant 0 : i32
    return %c0_i32, %c0_i32_0 : i32, i32
  }
  func.func @transform_7(%arg0: i32) -> (i32, i32) {
    %c0_i32 = arith.constant 0 : i32
    %c0_i32_0 = arith.constant 0 : i32
    return %arg0, %c0_i32 : i32, i32
  }
}

</mosaic_0001>

<llo_original>
// kernel: cnn1d_forward.1
$region0: #{cnn1d_forward.1}
  #allocation0 [shape = 'u32[]', space=smem, size = 0x4, offset = 0x4, fixed_abs, tag = 'smem constant byte address 0x4 - core index']
  #allocation1 [shape = 'u32[72,128]{1,0:T(1,128)}', space=vmem, size = 0x9000, scoped, tag = 'internal scratch']
  %s0 = inlined_call_operand.vmem [shape: f32[256,16], index: 0, kind: input, shape index: {}]
  %s1 = inlined_call_operand.vmem [shape: f32[16,256], index: 1, kind: input, shape index: {}]
  %s2 = inlined_call_operand.vmem [shape: f32[1,256], index: 2, kind: input, shape index: {}]
  %s3 = inlined_call_operand.vmem [shape: f32[128,128], index: 3, kind: input, shape index: {}]
  %s4 = inlined_call_operand.vmem [shape: f32[1,128], index: 4, kind: input, shape index: {}]
  %s5 = inlined_call_operand.vmem [shape: f32[128,128], index: 5, kind: input, shape index: {}]
  %s6 = inlined_call_operand.vmem [shape: f32[1,128], index: 6, kind: input, shape index: {}]
  %s7 = inlined_call_operand.vmem [shape: f32[256,128], index: 7, kind: output, shape index: {}]
  %s8 = sld [smem:[#allocation0]]
  $region61: #{cnn1d_forward.1} parent=0
    _
  %s10 = ssub.s32 1, %s8
  %s11 = scalar_select 0, %s10, %s8
  loop: start=0, step=1, limit=4
  $region2: #{cnn1d_forward.1} parent=0 // loop_pre_header
    _
  $region3: #{cnn1d_forward.1} parent=0 // loop_header
    %s13 = sphi 0, %s17
    %p14 = scmp.ge.s32.totalorder %s13, 4
    %s23 = sphi 0, %s25
    %s26 = sphi 0, %s23
    %s27 = sphi 0, %s26
    %s43 = sphi 0, %s27
    %s47 = sphi 0, %s47
    %s49 = sphi 0, %s47
    %s50 = sphi 0, %s49
    %s64 = sphi 0, %s50
    %s68 = sphi 0, %s68
    %s70 = sphi 0, %s68
    %s71 = sphi 0, %s70
    %s85 = sphi 0, %s71
    %s89 = sphi 0, %s89
    %s91 = sphi 0, %s89
    %s92 = sphi 0, %s91
    %s106 = sphi 0, %s92
    %s110 = sphi 0, %s110
    %s112 = sphi 0, %s110
    %s113 = sphi 0, %s112
    %s127 = sphi 0, %s113
    %s131 = sphi 0, %s131
    %s133 = sphi 0, %s131
    %s134 = sphi 0, %s133
    %s148 = sphi 0, %s134
    %s152 = sphi 0, %s152
    %s154 = sphi 0, %s152
    %s155 = sphi 0, %s154
    %s169 = sphi 0, %s155
    %s175 = sphi 0, %s177
    %s178 = sphi 0, %s175
    %s179 = sphi 0, %s178
    %s195 = sphi 0, %s179
  $region4: #{cnn1d_forward.1} parent=0 // loop_header_branch
    %16 = sbr.rel (%p14) target = $region8
  $region5: #{cnn1d_forward.1} parent=0 // loop_body
    %s18 = ssub.s32 %s13, 1
    %s19 = ssub.s32 %s13, 2
    %s20 = sadd.s32 %s13, 1
    %s21 = ssub.s32 %s13, %s20
    %p22 = scmp.eq.s32.totalorder %s21, 0
    %s24 = sadd.s32 %s23, 1
    %s25 = scalar_select %p22, %s23, %s24
    %p28 = pneg %p22
    %p29 = scmp.eq.s32.totalorder %s13, 1
    %p30 = por %p28, %p29
    %p31 = scmp.ne.s32.totalorder %s23, %s26
    %p32 = scmp.eq.s32.totalorder %s13, 0
    %p33 = por %p31, %p32
    %p34 = scmp.ne.s32.totalorder %s23, %s26
    %p35 = scmp.eq.s32.totalorder %s18, 1
    %p36 = por %p34, %p35
    %p37 = scmp.ne.s32.totalorder %s26, %s27
    %p38 = scmp.eq.s32.totalorder %s18, 0
    %p39 = por %p37, %p38
    %p40 = scmp.ne.s32.totalorder %s26, %s27
    %p41 = scmp.eq.s32.totalorder %s19, 1
    %p42 = por %p40, %p41
    %p44 = scmp.ne.s32.totalorder %s27, %s43
    %p45 = scmp.eq.s32.totalorder %s19, 0
    %p46 = por %p44, %p45
    %s48 = sadd.s32 %s47, 1
    %p51 = scmp.eq.s32.totalorder %s13, 1
    %p52 = scmp.ne.s32.totalorder %s47, %s49
    %p53 = scmp.eq.s32.totalorder %s13, 0
    %p54 = por %p52, %p53
    %p55 = scmp.ne.s32.totalorder %s47, %s49
    %p56 = scmp.eq.s32.totalorder %s18, 1
    %p57 = por %p55, %p56
    %p58 = scmp.ne.s32.totalorder %s49, %s50
    %p59 = scmp.eq.s32.totalorder %s18, 0
    %p60 = por %p58, %p59
    %p61 = scmp.ne.s32.totalorder %s49, %s50
    %p62 = scmp.eq.s32.totalorder %s19, 1
    %p63 = por %p61, %p62
    %p65 = scmp.ne.s32.totalorder %s50, %s64
    %p66 = scmp.eq.s32.totalorder %s19, 0
    %p67 = por %p65, %p66
    %s69 = sadd.s32 %s68, 1
    %p72 = scmp.eq.s32.totalorder %s13, 1
    %p73 = scmp.ne.s32.totalorder %s68, %s70
    %p74 = scmp.eq.s32.totalorder %s13, 0
    %p75 = por %p73, %p74
    %p76 = scmp.ne.s32.totalorder %s68, %s70
    %p77 = scmp.eq.s32.totalorder %s18, 1
    %p78 = por %p76, %p77
    %p79 = scmp.ne.s32.totalorder %s70, %s71
    %p80 = scmp.eq.s32.totalorder %s18, 0
    %p81 = por %p79, %p80
    %p82 = scmp.ne.s32.totalorder %s70, %s71
    %p83 = scmp.eq.s32.totalorder %s19, 1
    %p84 = por %p82, %p83
    %p86 = scmp.ne.s32.totalorder %s71, %s85
    %p87 = scmp.eq.s32.totalorder %s19, 0
    %p88 = por %p86, %p87
    %s90 = sadd.s32 %s89, 1
    %p93 = scmp.eq.s32.totalorder %s13, 1
    %p94 = scmp.ne.s32.totalorder %s89, %s91
    %p95 = scmp.eq.s32.totalorder %s13, 0
    %p96 = por %p94, %p95
    %p97 = scmp.ne.s32.totalorder %s89, %s91
    %p98 = scmp.eq.s32.totalorder %s18, 1
    %p99 = por %p97, %p98
    %p100 = scmp.ne.s32.totalorder %s91, %s92
    %p101 = scmp.eq.s32.totalorder %s18, 0
    %p102 = por %p100, %p101
    %p103 = scmp.ne.s32.totalorder %s91, %s92
    %p104 = scmp.eq.s32.totalorder %s19, 1
    %p105 = por %p103, %p104
    %p107 = scmp.ne.s32.totalorder %s92, %s106
    %p108 = scmp.eq.s32.totalorder %s19, 0
    %p109 = por %p107, %p108
    %s111 = sadd.s32 %s110, 1
    %p114 = scmp.eq.s32.totalorder %s13, 1
    %p115 = scmp.ne.s32.totalorder %s110, %s112
    %p116 = scmp.eq.s32.totalorder %s13, 0
    %p117 = por %p115, %p116
    %p118 = scmp.ne.s32.totalorder %s110, %s112
    %p119 = scmp.eq.s32.totalorder %s18, 1
    %p120 = por %p118, %p119
    %p121 = scmp.ne.s32.totalorder %s112, %s113
    %p122 = scmp.eq.s32.totalorder %s18, 0
    %p123 = por %p121, %p122
    %p124 = scmp.ne.s32.totalorder %s112, %s113
    %p125 = scmp.eq.s32.totalorder %s19, 1
    %p126 = por %p124, %p125
    %p128 = scmp.ne.s32.totalorder %s113, %s127
    %p129 = scmp.eq.s32.totalorder %s19, 0
    %p130 = por %p128, %p129
    %s132 = sadd.s32 %s131, 1
    %p135 = scmp.eq.s32.totalorder %s13, 1
    %p136 = scmp.ne.s32.totalorder %s131, %s133
    %p137 = scmp.eq.s32.totalorder %s13, 0
    %p138 = por %p136, %p137
    %p139 = scmp.ne.s32.totalorder %s131, %s133
    %p140 = scmp.eq.s32.totalorder %s18, 1
    %p141 = por %p139, %p140
    %p142 = scmp.ne.s32.totalorder %s133, %s134
    %p143 = scmp.eq.s32.totalorder %s18, 0
    %p144 = por %p142, %p143
    %p145 = scmp.ne.s32.totalorder %s133, %s134
    %p146 = scmp.eq.s32.totalorder %s19, 1
    %p147 = por %p145, %p146
    %p149 = scmp.ne.s32.totalorder %s134, %s148
    %p150 = scmp.eq.s32.totalorder %s19, 0
    %p151 = por %p149, %p150
    %s153 = sadd.s32 %s152, 1
    %p156 = scmp.eq.s32.totalorder %s13, 1
    %p157 = scmp.ne.s32.totalorder %s152, %s154
    %p158 = scmp.eq.s32.totalorder %s13, 0
    %p159 = por %p157, %p158
    %p160 = scmp.ne.s32.totalorder %s152, %s154
    %p161 = scmp.eq.s32.totalorder %s18, 1
    %p162 = por %p160, %p161
    %p163 = scmp.ne.s32.totalorder %s154, %s155
    %p164 = scmp.eq.s32.totalorder %s18, 0
    %p165 = por %p163, %p164
    %p166 = scmp.ne.s32.totalorder %s154, %s155
    %p167 = scmp.eq.s32.totalorder %s19, 1
    %p168 = por %p166, %p167
    %p170 = scmp.ne.s32.totalorder %s155, %s169
    %p171 = scmp.eq.s32.totalorder %s19, 0
    %p172 = por %p170, %p171
    %s173 = ssub.s32 %s13, %s20
    %p174 = scmp.eq.s32.totalorder %s173, 0
    %s176 = sadd.s32 %s175, 1
    %s177 = scalar_select %p174, %s175, %s176
    %p180 = pneg %p174
    %p181 = scmp.eq.s32.totalorder %s13, 1
    %p182 = por %p180, %p181
    %p183 = scmp.ne.s32.totalorder %s175, %s178
    %p184 = scmp.eq.s32.totalorder %s13, 0
    %p185 = por %p183, %p184
    %p186 = scmp.ne.s32.totalorder %s175, %s178
    %p187 = scmp.eq.s32.totalorder %s18, 1
    %p188 = por %p186, %p187
    %p189 = scmp.ne.s32.totalorder %s178, %s179
    %p190 = scmp.eq.s32.totalorder %s18, 0
    %p191 = por %p189, %p190
    %p192 = scmp.ne.s32.totalorder %s178, %s179
    %p193 = scmp.eq.s32.totalorder %s19, 1
    %p194 = por %p192, %p193
    %p196 = scmp.ne.s32.totalorder %s179, %s195
    %p197 = scmp.eq.s32.totalorder %s19, 0
    %p198 = por %p196, %p197
    %p199 = scmp.le.s32.totalorder 1, %s13
    %p200 = scmp.lt.s32.totalorder %s13, 3
    %p201 = pnand %p199, %p200
    %p202 = pneg %p201
    // Predicated region
    $region9: #{cnn1d_forward.1} parent=5 // pred_check
      _
    $region10: #{cnn1d_forward.1} parent=5 // pred_check_branch
      %204 = sbr.rel (%p201) target = $region12
    $region11: #{cnn1d_forward.1} parent=5 // pred_region
      %s205 = ssub.s32 %s13, 1
      // Predicated region
      $region13: #{cnn1d_forward.1} parent=11 // pred_check
        %p206 = pneg %p60
      $region14: #{cnn1d_forward.1} parent=11 // pred_check_branch
        %208 = sbr.rel (%p206) target = $region16
      $region15: #{cnn1d_forward.1} parent=11 // pred_region
        _
      $region16: #{cnn1d_forward.1} parent=11 // pred_fallthru
        _
      // Predicated region
      $region17: #{cnn1d_forward.1} parent=11 // pred_check
        %p209 = pneg %p81
      $region18: #{cnn1d_forward.1} parent=11 // pred_check_branch
        %211 = sbr.rel (%p209) target = $region20
      $region19: #{cnn1d_forward.1} parent=11 // pred_region
        _
      $region20: #{cnn1d_forward.1} parent=11 // pred_fallthru
        _
      // Predicated region
      $region21: #{cnn1d_forward.1} parent=11 // pred_check
        %p212 = pneg %p102
      $region22: #{cnn1d_forward.1} parent=11 // pred_check_branch
        %214 = sbr.rel (%p212) target = $region24
      $region23: #{cnn1d_forward.1} parent=11 // pred_region
        _
      $region24: #{cnn1d_forward.1} parent=11 // pred_fallthru
        _
      // Predicated region
      $region25: #{cnn1d_forward.1} parent=11 // pred_check
        %p215 = pneg %p123
      $region26: #{cnn1d_forward.1} parent=11 // pred_check_branch
        %217 = sbr.rel (%p215) target = $region28
      $region27: #{cnn1d_forward.1} parent=11 // pred_region
        _
      $region28: #{cnn1d_forward.1} parent=11 // pred_fallthru
        _
      // Predicated region
      $region29: #{cnn1d_forward.1} parent=11 // pred_check
        %p218 = pneg %p144
      $region30: #{cnn1d_forward.1} parent=11 // pred_check_branch
        %220 = sbr.rel (%p218) target = $region32
      $region31: #{cnn1d_forward.1} parent=11 // pred_region
        _
      $region32: #{cnn1d_forward.1} parent=11 // pred_fallthru
        _
      // Predicated region
      $region33: #{cnn1d_forward.1} parent=11 // pred_check
        %p221 = pneg %p165
      $region34: #{cnn1d_forward.1} parent=11 // pred_check_branch
        %223 = sbr.rel (%p221) target = $region36
      $region35: #{cnn1d_forward.1} parent=11 // pred_region
        _
      $region36: #{cnn1d_forward.1} parent=11 // pred_fallthru
        _
    $region12: #{cnn1d_forward.1} parent=5 // pred_fallthru
      _
    %p224 = scmp.lt.s32.totalorder %s13, 2
    // Predicated region
    $region37: #{cnn1d_forward.1} parent=5 // pred_check
      %p225 = pneg %p224
    $region38: #{cnn1d_forward.1} parent=5 // pred_check_branch
      %227 = sbr.rel (%p225) target = $region40
    $region39: #{cnn1d_forward.1} parent=5 // pred_region
      // Predicated region
      $region41: #{cnn1d_forward.1} parent=39 // pred_check
        %p228 = pneg %p33
      $region42: #{cnn1d_forward.1} parent=39 // pred_check_branch
        %230 = sbr.rel (%p228) target = $region44
      $region43: #{cnn1d_forward.1} parent=39 // pred_region
        %s231 = smul.u32 16, %s13
        %p232 = scmp.lt.s32.totalorder %s231, 31
        %s233 = scalar_select %p232, %s231, 31
        %s234 = smul.addr %s233, 8
        %s235 = scalar_lea.vmem %s0, %s234
        %s236 = smul.u32 16, %s13
      $region44: #{cnn1d_forward.1} parent=39 // pred_fallthru
        _
    $region40: #{cnn1d_forward.1} parent=5 // pred_fallthru
      _
    %p237 = scmp.le.s32.totalorder 1, %s13
    %p238 = scmp.lt.s32.totalorder %s13, 3
    %p239 = pnand %p237, %p238
    %p240 = pneg %p239
    // Predicated region
    $region45: #{cnn1d_forward.1} parent=5 // pred_check
      _
    $region46: #{cnn1d_forward.1} parent=5 // pred_check_branch
      %242 = sbr.rel (%p239) target = $region48
    $region47: #{cnn1d_forward.1} parent=5 // pred_region
      %s243 = ssub.s32 %s13, 1
      %s244 = smul.u32 16, %s18
      %p245 = scmp.lt.s32.totalorder %s244, 31
      %s246 = scalar_select %p245, %s244, 31
      %s247 = smul.addr %s246, 8
      %s248 = scalar_lea.vmem %s0, %s247
      %p249 = pneg %p39
      %p250 = pneg %p36
      %p251 = pneg %p60
      %p252 = pneg %p57
      %p253 = pneg %p81
      %p254 = pneg %p78
      %p255 = pneg %p102
      %p256 = pneg %p99
      %p257 = pneg %p123
      %p258 = pneg %p120
      %p259 = pneg %p144
      %p260 = pneg %p141
      %p261 = pneg %p165
      %p262 = pneg %p162
      %p263 = pneg %p191
      %p264 = pneg %p188
      %s265 = smul.u32 16, %s18
      %p266 = scmp.lt.s32.totalorder %s265, 31
      %s267 = scalar_select %p266, %s265, 31
      %s268 = smul.addr %s267, 8
      %s269 = scalar_lea.vmem %s7, %s268
      %s270 = smul.u32 16, %s18
      %p271 = scmp.lt.s32.totalorder %s270, 31
      %s272 = scalar_select %p271, %s270, 31
      %s273 = smul.addr %s272, 8
      %s274 = scalar_lea.vmem %s0, %s273
      %s275 = smul.u32 16, %s18
      %s276 = smul.u32 16, %s18
      %p277 = scmp.lt.s32.totalorder %s276, 31
      %s278 = scalar_select %p277, %s276, 31
      %s279 = smul.addr %s278, 8
      %s280 = scalar_lea.vmem %s7, %s279
      %s281 = smul.u32 16, %s18
      %v282 = vld [vmem:[%s274] sm:$0xff]
      %v283 = vld [vmem:[%s274 + $0x8] sm:$0xff]
      %v284 = vld [vmem:[%s274 + $0x10] sm:$0xff]
      %v285 = vld [vmem:[%s274 + $0x18] sm:$0xff]
      %v286 = vld [vmem:[%s274 + $0x20] sm:$0xff]
      %v287 = vld [vmem:[%s274 + $0x28] sm:$0xff]
      %v288 = vld [vmem:[%s274 + $0x30] sm:$0xff]
      %v289 = vld [vmem:[%s274 + $0x38] sm:$0xff]
      %v290 = vld [vmem:[%s274 + $0x40] sm:$0xff]
      %v291 = vld [vmem:[%s274 + $0x48] sm:$0xff]
      %v292 = vld [vmem:[%s274 + $0x50] sm:$0xff]
      %v293 = vld [vmem:[%s274 + $0x58] sm:$0xff]
      %v294 = vld [vmem:[%s274 + $0x60] sm:$0xff]
      %v295 = vld [vmem:[%s274 + $0x68] sm:$0xff]
      %v296 = vld [vmem:[%s274 + $0x70] sm:$0xff]
      %v297 = vld [vmem:[%s274 + $0x78] sm:$0xff]
      %v298 = vld [vmem:[%s1] sm:$0xff]
      %v299 = vld [vmem:[%s1 + $0x8] sm:$0xff]
      %v300 = vld [vmem:[%s1 + $0x10] sm:$0xff]
      %v301 = vld [vmem:[%s1 + $0x18] sm:$0xff]
      %v302 = vld [vmem:[%s2] sm:$0x3]
      %v304 = vperm.slane %v302, 0
      %v305 = vperm.slane %v302, 1
      %vm308 = vcmask 130048
      %v310 = vsel %vm308, %v282, 0
      %v313 = vsel %vm308, %v283, 0
      %v316 = vsel %vm308, %v284, 0
      %v319 = vsel %vm308, %v285, 0
      %v322 = vsel %vm308, %v286, 0
      %v325 = vsel %vm308, %v287, 0
      %v328 = vsel %vm308, %v288, 0
      %v331 = vsel %vm308, %v289, 0
      %v334 = vsel %vm308, %v290, 0
      %v337 = vsel %vm308, %v291, 0
      %v340 = vsel %vm308, %v292, 0
      %v343 = vsel %vm308, %v293, 0
      %v346 = vsel %vm308, %v294, 0
      %v349 = vsel %vm308, %v295, 0
      %v352 = vsel %vm308, %v296, 0
      %v355 = vsel %vm308, %v297, 0
      %357 = vmatpush.msra.mxu0 0.0
      %358 = vmatpush.msra.mxu0 0.0
      %359 = vmatpush.msra.mxu0 0.0
      %360 = vmatpush.msra.mxu0 0.0
      %361 = vmatpush.msra.mxu0 0.0
      %362 = vmatpush.msra.mxu0 0.0
      %363 = vmatpush.msra.mxu0 0.0
      %364 = vmatpush.msra.mxu0 0.0
      %365 = vmatpush.msra.mxu0 0.0
      %366 = vmatpush.msra.mxu0 0.0
      %367 = vmatpush.msra.mxu0 0.0
      %368 = vmatpush.msra.mxu0 0.0
      %369 = vmatpush.msra.mxu0 0.0
      %370 = vmatpush.msra.mxu0 0.0
      %371 = vmatpush.msra.mxu0 %v300
      %372 = vmatpush.msra.mxu0 %v298
      %373 = vmatmul.f32.gmra.mxu0 %v310
      %v374 = vpop.f32.mrf.mxu0
      %v375 = vadd.f32 %v304, %v374
      %376 = vmatmul.f32.gmra.mxu0 %v313
      %v377 = vpop.f32.mrf.mxu0
      %v378 = vadd.f32 %v304, %v377
      %379 = vmatmul.f32.gmra.mxu0 %v316
      %v380 = vpop.f32.mrf.mxu0
      %v381 = vadd.f32 %v304, %v380
      %382 = vmatmul.f32.gmra.mxu0 %v319
      %v383 = vpop.f32.mrf.mxu0
      %v384 = vadd.f32 %v304, %v383
      %385 = vmatmul.f32.gmra.mxu0 %v322
      %v386 = vpop.f32.mrf.mxu0
      %v387 = vadd.f32 %v304, %v386
      %388 = vmatmul.f32.gmra.mxu0 %v325
      %v389 = vpop.f32.mrf.mxu0
      %v390 = vadd.f32 %v304, %v389
      %391 = vmatmul.f32.gmra.mxu0 %v328
      %v392 = vpop.f32.mrf.mxu0
      %v393 = vadd.f32 %v304, %v392
      %394 = vmatmul.f32.gmra.mxu0 %v331
      %v395 = vpop.f32.mrf.mxu0
      %v396 = vadd.f32 %v304, %v395
      %397 = vmatmul.f32.gmra.mxu0 %v334
      %v398 = vpop.f32.mrf.mxu0
      %v399 = vadd.f32 %v304, %v398
      %400 = vmatmul.f32.gmra.mxu0 %v337
      %v401 = vpop.f32.mrf.mxu0
      %v402 = vadd.f32 %v304, %v401
      %403 = vmatmul.f32.gmra.mxu0 %v340
      %v404 = vpop.f32.mrf.mxu0
      %v405 = vadd.f32 %v304, %v404
      %406 = vmatmul.f32.gmra.mxu0 %v343
      %v407 = vpop.f32.mrf.mxu0
      %v408 = vadd.f32 %v304, %v407
      %409 = vmatmul.f32.gmra.mxu0 %v346
      %v410 = vpop.f32.mrf.mxu0
      %v411 = vadd.f32 %v304, %v410
      %412 = vmatmul.f32.gmra.mxu0 %v349
      %v413 = vpop.f32.mrf.mxu0
      %v414 = vadd.f32 %v304, %v413
      %415 = vmatmul.f32.gmra.mxu0 %v352
      %v416 = vpop.f32.mrf.mxu0
      %v417 = vadd.f32 %v304, %v416
      %418 = vmatmul.f32.gmra.mxu0 %v355
      %v419 = vpop.f32.mrf.mxu0
      %v420 = vadd.f32 %v304, %v419
      %421 = vdwg.mxu0
      %422 = vmatpush.msra.mxu0 0.0
      %423 = vmatpush.msra.mxu0 0.0
      %424 = vmatpush.msra.mxu0 0.0
      %425 = vmatpush.msra.mxu0 0.0
      %426 = vmatpush.msra.mxu0 0.0
      %427 = vmatpush.msra.mxu0 0.0
      %428 = vmatpush.msra.mxu0 0.0
      %429 = vmatpush.msra.mxu0 0.0
      %430 = vmatpush.msra.mxu0 0.0
      %431 = vmatpush.msra.mxu0 0.0
      %432 = vmatpush.msra.mxu0 0.0
      %433 = vmatpush.msra.mxu0 0.0
      %434 = vmatpush.msra.mxu0 0.0
      %435 = vmatpush.msra.mxu0 0.0
      %436 = vmatpush.msra.mxu0 %v301
      %437 = vmatpush.msra.mxu0 %v299
      %438 = vmatmul.f32.gmra.mxu0 %v310
      %v439 = vpop.f32.mrf.mxu0
      %v440 = vadd.f32 %v305, %v439
      %441 = vmatmul.f32.gmra.mxu0 %v313
      %v442 = vpop.f32.mrf.mxu0
      %v443 = vadd.f32 %v305, %v442
      %444 = vmatmul.f32.gmra.mxu0 %v316
      %v445 = vpop.f32.mrf.mxu0
      %v446 = vadd.f32 %v305, %v445
      %447 = vmatmul.f32.gmra.mxu0 %v319
      %v448 = vpop.f32.mrf.mxu0
      %v449 = vadd.f32 %v305, %v448
      %450 = vmatmul.f32.gmra.mxu0 %v322
      %v451 = vpop.f32.mrf.mxu0
      %v452 = vadd.f32 %v305, %v451
      %453 = vmatmul.f32.gmra.mxu0 %v325
      %v454 = vpop.f32.mrf.mxu0
      %v455 = vadd.f32 %v305, %v454
      %456 = vmatmul.f32.gmra.mxu0 %v328
      %v457 = vpop.f32.mrf.mxu0
      %v458 = vadd.f32 %v305, %v457
      %459 = vmatmul.f32.gmra.mxu0 %v331
      %v460 = vpop.f32.mrf.mxu0
      %v461 = vadd.f32 %v305, %v460
      %462 = vmatmul.f32.gmra.mxu0 %v334
      %v463 = vpop.f32.mrf.mxu0
      %v464 = vadd.f32 %v305, %v463
      %465 = vmatmul.f32.gmra.mxu0 %v337
      %v466 = vpop.f32.mrf.mxu0
      %v467 = vadd.f32 %v305, %v466
      %468 = vmatmul.f32.gmra.mxu0 %v340
      %v469 = vpop.f32.mrf.mxu0
      %v470 = vadd.f32 %v305, %v469
      %471 = vmatmul.f32.gmra.mxu0 %v343
      %v472 = vpop.f32.mrf.mxu0
      %v473 = vadd.f32 %v305, %v472
      %474 = vmatmul.f32.gmra.mxu0 %v346
      %v475 = vpop.f32.mrf.mxu0
      %v476 = vadd.f32 %v305, %v475
      %477 = vmatmul.f32.gmra.mxu0 %v349
      %v478 = vpop.f32.mrf.mxu0
      %v479 = vadd.f32 %v305, %v478
      %480 = vmatmul.f32.gmra.mxu0 %v352
      %v481 = vpop.f32.mrf.mxu0
      %v482 = vadd.f32 %v305, %v481
      %483 = vmatmul.f32.gmra.mxu0 %v355
      %v484 = vpop.f32.mrf.mxu0
      %v485 = vadd.f32 %v305, %v484
      %486 = vdwg.mxu0
      %v487 = vmax.f32 %v375, %v440
      %v488 = vmax.f32 %v378, %v443
      %v489 = vmax.f32 %v381, %v446
      %v490 = vmax.f32 %v384, %v449
      %v491 = vmax.f32 %v387, %v452
      %v492 = vmax.f32 %v390, %v455
      %v493 = vmax.f32 %v393, %v458
      %v494 = vmax.f32 %v396, %v461
      %v495 = vmax.f32 %v399, %v464
      %v496 = vmax.f32 %v402, %v467
      %v497 = vmax.f32 %v405, %v470
      %v498 = vmax.f32 %v408, %v473
      %v499 = vmax.f32 %v411, %v476
      %v500 = vmax.f32 %v414, %v479
      %v501 = vmax.f32 %v417, %v482
      %v502 = vmax.f32 %v420, %v485
      %v503 = vmax.f32 %v487, 0.0
      %v504 = vmax.f32 %v488, 0.0
      %v505 = vmax.f32 %v489, 0.0
      %v506 = vmax.f32 %v490, 0.0
      %v507 = vmax.f32 %v491, 0.0
      %v508 = vmax.f32 %v492, 0.0
      %v509 = vmax.f32 %v493, 0.0
      %v510 = vmax.f32 %v494, 0.0
      %v511 = vmax.f32 %v495, 0.0
      %v512 = vmax.f32 %v496, 0.0
      %v513 = vmax.f32 %v497, 0.0
      %v514 = vmax.f32 %v498, 0.0
      %v515 = vmax.f32 %v499, 0.0
      %v516 = vmax.f32 %v500, 0.0
      %v517 = vmax.f32 %v501, 0.0
      %v518 = vmax.f32 %v502, 0.0
      %v519 = vld [vmem:[%s3] sm:$0xff]
      %v520 = vld [vmem:[%s3 + $0x8] sm:$0xff]
      %v521 = vld [vmem:[%s3 + $0x10] sm:$0xff]
      %v522 = vld [vmem:[%s3 + $0x18] sm:$0xff]
      %v523 = vld [vmem:[%s3 + $0x20] sm:$0xff]
      %v524 = vld [vmem:[%s3 + $0x28] sm:$0xff]
      %v525 = vld [vmem:[%s3 + $0x30] sm:$0xff]
      %v526 = vld [vmem:[%s3 + $0x38] sm:$0xff]
      %v527 = vld [vmem:[%s3 + $0x40] sm:$0xff]
      %v528 = vld [vmem:[%s3 + $0x48] sm:$0xff]
      %v529 = vld [vmem:[%s3 + $0x50] sm:$0xff]
      %v530 = vld [vmem:[%s3 + $0x58] sm:$0xff]
      %v531 = vld [vmem:[%s3 + $0x60] sm:$0xff]
      %v532 = vld [vmem:[%s3 + $0x68] sm:$0xff]
      %v533 = vld [vmem:[%s3 + $0x70] sm:$0xff]
      %v534 = vld [vmem:[%s3 + $0x78] sm:$0xff]
      %v535 = vld [vmem:[%s4] sm:$0x1]
      %v537 = vperm.slane %v535, 0
      %539 = vmatpush.msra.mxu0 %v534
      %540 = vmatpush.msra.mxu0 %v533
      %541 = vmatpush.msra.mxu0 %v532
      %542 = vmatpush.msra.mxu0 %v531
      %543 = vmatpush.msra.mxu0 %v530
      %544 = vmatpush.msra.mxu0 %v529
      %545 = vmatpush.msra.mxu0 %v528
      %546 = vmatpush.msra.mxu0 %v527
      %547 = vmatpush.msra.mxu0 %v526
      %548 = vmatpush.msra.mxu0 %v525
      %549 = vmatpush.msra.mxu0 %v524
      %550 = vmatpush.msra.mxu0 %v523
      %551 = vmatpush.msra.mxu0 %v522
      %552 = vmatpush.msra.mxu0 %v521
      %553 = vmatpush.msra.mxu0 %v520
      %554 = vmatpush.msra.mxu0 %v519
      %555 = vmatmul.f32.gmra.mxu0 %v503
      %v556 = vpop.f32.mrf.mxu0
      %v557 = vadd.f32 %v537, %v556
      %558 = vmatmul.f32.gmra.mxu0 %v504
      %v559 = vpop.f32.mrf.mxu0
      %v560 = vadd.f32 %v537, %v559
      %561 = vmatmul.f32.gmra.mxu0 %v505
      %v562 = vpop.f32.mrf.mxu0
      %v563 = vadd.f32 %v537, %v562
      %564 = vmatmul.f32.gmra.mxu0 %v506
      %v565 = vpop.f32.mrf.mxu0
      %v566 = vadd.f32 %v537, %v565
      %567 = vmatmul.f32.gmra.mxu0 %v507
      %v568 = vpop.f32.mrf.mxu0
      %v569 = vadd.f32 %v537, %v568
      %570 = vmatmul.f32.gmra.mxu0 %v508
      %v571 = vpop.f32.mrf.mxu0
      %v572 = vadd.f32 %v537, %v571
      %573 = vmatmul.f32.gmra.mxu0 %v509
      %v574 = vpop.f32.mrf.mxu0
      %v575 = vadd.f32 %v537, %v574
      %576 = vmatmul.f32.gmra.mxu0 %v510
      %v577 = vpop.f32.mrf.mxu0
      %v578 = vadd.f32 %v537, %v577
      %579 = vmatmul.f32.gmra.mxu0 %v511
      %v580 = vpop.f32.mrf.mxu0
      %v581 = vadd.f32 %v537, %v580
      %582 = vmatmul.f32.gmra.mxu0 %v512
      %v583 = vpop.f32.mrf.mxu0
      %v584 = vadd.f32 %v537, %v583
      %585 = vmatmul.f32.gmra.mxu0 %v513
      %v586 = vpop.f32.mrf.mxu0
      %v587 = vadd.f32 %v537, %v586
      %588 = vmatmul.f32.gmra.mxu0 %v514
      %v589 = vpop.f32.mrf.mxu0
      %v590 = vadd.f32 %v537, %v589
      %591 = vmatmul.f32.gmra.mxu0 %v515
      %v592 = vpop.f32.mrf.mxu0
      %v593 = vadd.f32 %v537, %v592
      %594 = vmatmul.f32.gmra.mxu0 %v516
      %v595 = vpop.f32.mrf.mxu0
      %v596 = vadd.f32 %v537, %v595
      %597 = vmatmul.f32.gmra.mxu0 %v517
      %v598 = vpop.f32.mrf.mxu0
      %v599 = vadd.f32 %v537, %v598
      %600 = vmatmul.f32.gmra.mxu0 %v518
      %v601 = vpop.f32.mrf.mxu0
      %v602 = vadd.f32 %v537, %v601
      %603 = vdwg.mxu0
      %v604 = vmax.f32 %v557, 0.0
      %v605 = vmax.f32 %v560, 0.0
      %v606 = vmax.f32 %v563, 0.0
      %v607 = vmax.f32 %v566, 0.0
      %v608 = vmax.f32 %v569, 0.0
      %v609 = vmax.f32 %v572, 0.0
      %v610 = vmax.f32 %v575, 0.0
      %v611 = vmax.f32 %v578, 0.0
      %v612 = vmax.f32 %v581, 0.0
      %v613 = vmax.f32 %v584, 0.0
      %v614 = vmax.f32 %v587, 0.0
      %v615 = vmax.f32 %v590, 0.0
      %v616 = vmax.f32 %v593, 0.0
      %v617 = vmax.f32 %v596, 0.0
      %v618 = vmax.f32 %v599, 0.0
      %v619 = vmax.f32 %v602, 0.0
      %v620 = vld [vmem:[%s5] sm:$0xff]
      %v621 = vld [vmem:[%s5 + $0x8] sm:$0xff]
      %v622 = vld [vmem:[%s5 + $0x10] sm:$0xff]
      %v623 = vld [vmem:[%s5 + $0x18] sm:$0xff]
      %v624 = vld [vmem:[%s5 + $0x20] sm:$0xff]
      %v625 = vld [vmem:[%s5 + $0x28] sm:$0xff]
      %v626 = vld [vmem:[%s5 + $0x30] sm:$0xff]
      %v627 = vld [vmem:[%s5 + $0x38] sm:$0xff]
      %v628 = vld [vmem:[%s5 + $0x40] sm:$0xff]
      %v629 = vld [vmem:[%s5 + $0x48] sm:$0xff]
      %v630 = vld [vmem:[%s5 + $0x50] sm:$0xff]
      %v631 = vld [vmem:[%s5 + $0x58] sm:$0xff]
      %v632 = vld [vmem:[%s5 + $0x60] sm:$0xff]
      %v633 = vld [vmem:[%s5 + $0x68] sm:$0xff]
      %v634 = vld [vmem:[%s5 + $0x70] sm:$0xff]
      %v635 = vld [vmem:[%s5 + $0x78] sm:$0xff]
      %v636 = vld [vmem:[%s6] sm:$0x1]
      %v638 = vperm.slane %v636, 0
      %640 = vmatpush.msra.mxu0 %v635
      %641 = vmatpush.msra.mxu0 %v634
      %642 = vmatpush.msra.mxu0 %v633
      %643 = vmatpush.msra.mxu0 %v632
      %644 = vmatpush.msra.mxu0 %v631
      %645 = vmatpush.msra.mxu0 %v630
      %646 = vmatpush.msra.mxu0 %v629
      %647 = vmatpush.msra.mxu0 %v628
      %648 = vmatpush.msra.mxu0 %v627
      %649 = vmatpush.msra.mxu0 %v626
      %650 = vmatpush.msra.mxu0 %v625
      %651 = vmatpush.msra.mxu0 %v624
      %652 = vmatpush.msra.mxu0 %v623
      %653 = vmatpush.msra.mxu0 %v622
      %654 = vmatpush.msra.mxu0 %v621
      %655 = vmatpush.msra.mxu0 %v620
      %656 = vmatmul.f32.gmra.mxu0 %v604
      %v657 = vpop.f32.mrf.mxu0
      %v658 = vadd.f32 %v638, %v657
      %659 = vmatmul.f32.gmra.mxu0 %v605
      %v660 = vpop.f32.mrf.mxu0
      %v661 = vadd.f32 %v638, %v660
      %662 = vmatmul.f32.gmra.mxu0 %v606
      %v663 = vpop.f32.mrf.mxu0
      %v664 = vadd.f32 %v638, %v663
      %665 = vmatmul.f32.gmra.mxu0 %v607
      %v666 = vpop.f32.mrf.mxu0
      %v667 = vadd.f32 %v638, %v666
      %668 = vmatmul.f32.gmra.mxu0 %v608
      %v669 = vpop.f32.mrf.mxu0
      %v670 = vadd.f32 %v638, %v669
      %671 = vmatmul.f32.gmra.mxu0 %v609
      %v672 = vpop.f32.mrf.mxu0
      %v673 = vadd.f32 %v638, %v672
      %674 = vmatmul.f32.gmra.mxu0 %v610
      %v675 = vpop.f32.mrf.mxu0
      %v676 = vadd.f32 %v638, %v675
      %677 = vmatmul.f32.gmra.mxu0 %v611
      %v678 = vpop.f32.mrf.mxu0
      %v679 = vadd.f32 %v638, %v678
      %680 = vmatmul.f32.gmra.mxu0 %v612
      %v681 = vpop.f32.mrf.mxu0
      %v682 = vadd.f32 %v638, %v681
      %683 = vmatmul.f32.gmra.mxu0 %v613
      %v684 = vpop.f32.mrf.mxu0
      %v685 = vadd.f32 %v638, %v684
      %686 = vmatmul.f32.gmra.mxu0 %v614
      %v687 = vpop.f32.mrf.mxu0
      %v688 = vadd.f32 %v638, %v687
      %689 = vmatmul.f32.gmra.mxu0 %v615
      %v690 = vpop.f32.mrf.mxu0
      %v691 = vadd.f32 %v638, %v690
      %692 = vmatmul.f32.gmra.mxu0 %v616
      %v693 = vpop.f32.mrf.mxu0
      %v694 = vadd.f32 %v638, %v693
      %695 = vmatmul.f32.gmra.mxu0 %v617
      %v696 = vpop.f32.mrf.mxu0
      %v697 = vadd.f32 %v638, %v696
      %698 = vmatmul.f32.gmra.mxu0 %v618
      %v699 = vpop.f32.mrf.mxu0
      %v700 = vadd.f32 %v638, %v699
      %701 = vmatmul.f32.gmra.mxu0 %v619
      %v702 = vpop.f32.mrf.mxu0
      %v703 = vadd.f32 %v638, %v702
      %704 = vdwg.mxu0
      %705 = vst [vmem:[%s280] sm:$0xff] %v658
      %706 = vst [vmem:[%s280 + $0x8] sm:$0xff] %v661
      %707 = vst [vmem:[%s280 + $0x10] sm:$0xff] %v664
      %708 = vst [vmem:[%s280 + $0x18] sm:$0xff] %v667
      %709 = vst [vmem:[%s280 + $0x20] sm:$0xff] %v670
      %710 = vst [vmem:[%s280 + $0x28] sm:$0xff] %v673
      %711 = vst [vmem:[%s280 + $0x30] sm:$0xff] %v676
      %712 = vst [vmem:[%s280 + $0x38] sm:$0xff] %v679
      %713 = vst [vmem:[%s280 + $0x40] sm:$0xff] %v682
      %714 = vst [vmem:[%s280 + $0x48] sm:$0xff] %v685
      %715 = vst [vmem:[%s280 + $0x50] sm:$0xff] %v688
      %716 = vst [vmem:[%s280 + $0x58] sm:$0xff] %v691
      %717 = vst [vmem:[%s280 + $0x60] sm:$0xff] %v694
      %718 = vst [vmem:[%s280 + $0x68] sm:$0xff] %v697
      %719 = vst [vmem:[%s280 + $0x70] sm:$0xff] %v700
      %720 = vst [vmem:[%s280 + $0x78] sm:$0xff] %v703
      %s721 = smul.u32 16, %s18
      %p722 = scmp.lt.s32.totalorder %s721, 31
      %s723 = scalar_select %p722, %s721, 31
      %s724 = smul.addr %s723, 8
      %s725 = scalar_lea.vmem %s7, %s724
      // Predicated region
      $region49: #{cnn1d_forward.1} parent=47 // pred_check
        %p726 = pneg %p188
      $region50: #{cnn1d_forward.1} parent=47 // pred_check_branch
        %728 = sbr.rel (%p726) target = $region52
      $region51: #{cnn1d_forward.1} parent=47 // pred_region
        %s729 = smul.u32 16, %s18
      $region52: #{cnn1d_forward.1} parent=47 // pred_fallthru
        _
    $region48: #{cnn1d_forward.1} parent=5 // pred_fallthru
      _
    %p730 = scmp.le.s32.totalorder 2, %s13
    // Predicated region
    $region53: #{cnn1d_forward.1} parent=5 // pred_check
      %p731 = pneg %p730
    $region54: #{cnn1d_forward.1} parent=5 // pred_check_branch
      %733 = sbr.rel (%p731) target = $region56
    $region55: #{cnn1d_forward.1} parent=5 // pred_region
      %s734 = ssub.s32 %s13, 2
      // Predicated region
      $region57: #{cnn1d_forward.1} parent=55 // pred_check
        %p735 = pneg %p194
      $region58: #{cnn1d_forward.1} parent=55 // pred_check_branch
        %737 = sbr.rel (%p735) target = $region60
      $region59: #{cnn1d_forward.1} parent=55 // pred_region
        %s738 = smul.u32 16, %s19
        %p739 = scmp.lt.s32.totalorder %s738, 31
        %s740 = scalar_select %p739, %s738, 31
        %s741 = smul.addr %s740, 8
        %s742 = scalar_lea.vmem %s7, %s741
      $region60: #{cnn1d_forward.1} parent=55 // pred_fallthru
        _
    $region56: #{cnn1d_forward.1} parent=5 // pred_fallthru
      _
  $region6: #{cnn1d_forward.1} parent=0 // loop_footer
    %s17 = sadd.s32 1, %s13
  $region7: #{cnn1d_forward.1} parent=0 // loop_footer_branch
    %12 = sbr.rel target = $region3
  $region8: #{cnn1d_forward.1} parent=0 // loop_exit
    _

</llo_original>
